<compile_context>
chip_gen: v7x
topology: tpu7x:2x2x1
jax: 0.10.0
libtpu: 0.0.40
codegen_flags: <defaults>
</compile_context>

<pallas_src>
import functools

import jax
import jax.numpy as jnp
from jax import lax
from jax.experimental import pallas as pl
from jax.experimental.pallas import tpu as pltpu

BN_EPS = 1e-5


def lin_layer_kernel(seed_ref, x_ref, wt_ref, *refs,
                     dropout_prob: float, use_batchnorm: bool, f_out_pad: int):
    o_ref = refs[-1]

    x = x_ref[...]                                   # (B, f_in)  bf16 (pre-cast)
    w = wt_ref[...]                                  # (f_in, TN) bf16

    # --- Linear: y = x @ W^T (bf16 MXU operands, f32 accumulation) ---
    y = jnp.dot(x, w, preferred_element_type=jnp.float32)   # (B, TN) f32

    if use_batchnorm:
        # Bias is intentionally NOT added: BN's batch-mean subtraction cancels it.
        g_ref, be_ref = refs[0], refs[1]
        # One-pass batch statistics (biased variance, matching torch training BN).
        mean = jnp.mean(y, axis=0, keepdims=True)                  # (1, TN)
        meansq = jnp.mean(y * y, axis=0, keepdims=True)            # (1, TN)
        var = meansq - mean * mean
        scale = g_ref[...] * lax.rsqrt(var + BN_EPS)               # EUP rsqrt
        shift = be_ref[...] - mean * scale
        y = y * scale + shift
    else:
        b_ref = refs[0]
        y = y + b_ref[...]

    # --- Activation (ReLU) ---
    y = jnp.maximum(y, 0.0)

    # --- Dropout (training mode, inverted scaling), counter-hash mask ---
    # TODO(synk): use pltpu.prng_seed/prng_random_bits on real HW (cheaper than hash).
    if dropout_prob > 0.0:
        B, TN = y.shape
        j = pl.program_id(0)
        row = lax.broadcasted_iota(jnp.int32, (B, TN), 0)
        col = lax.broadcasted_iota(jnp.int32, (B, TN), 1) + j * TN
        # Unique global element id (wraps for B * f_out_pad > 2^31 -- fine in practice).
        h = row * f_out_pad + col + seed_ref[0] * 0x27D4EB2F
        # lowbias32-style mixer with LOGICAL shifts (no sign-extension bias).
        h = (h ^ lax.shift_right_logical(h, 16)) * 0x45D9F3B
        h = (h ^ lax.shift_right_logical(h, 13)) * 0x45D9F3B
        h = h ^ lax.shift_right_logical(h, 16)
        bits24 = h & 0x00FFFFFF                       # uniform in [0, 2^24)
        thresh = int(round(dropout_prob * float(1 << 24)))
        keep = bits24 >= thresh                       # P(keep) = 1 - p
        y = jnp.where(keep, y * (1.0 / (1.0 - dropout_prob)), 0.0)

    o_ref[...] = y.astype(o_ref.dtype)


def _round_up(n, m):
    return (n + m - 1) // m * m


def prepare_params(w, b, gamma, beta):
    """One-time parameter prep: torch-layout W (f_out, f_in) -> (f_in, f_out_pad) bf16.
    f_out is padded to 256 so tiles fill the 256-wide MXU on v6e/v7x.
    # TODO(synk): on v5e (128x128 MXU) 128-alignment (and optionally int8 W with the
    # scale folded into BN) would avoid the extra padded columns."""
    f_out, f_in = w.shape
    f_out_pad = _round_up(f_out, 256)
    pad = f_out_pad - f_out
    wt = jnp.pad(w.T, ((0, 0), (0, pad))).astype(jnp.bfloat16)
    b2 = jnp.pad(b, (0, pad)).reshape(1, f_out_pad).astype(jnp.float32)
    g2 = jnp.pad(gamma, (0, pad)).reshape(1, f_out_pad).astype(jnp.float32)
    be2 = jnp.pad(beta, (0, pad)).reshape(1, f_out_pad).astype(jnp.float32)
    return wt, b2, g2, be2, f_out


def _pick_tn(f_out_pad):
    # Prefer 256-wide-MXU-friendly tiles; prefer >=2 grid steps so v7x's second TC works.
    if f_out_pad % 512 == 0 and f_out_pad // 512 >= 2:
        return 512
    if f_out_pad % 256 == 0:
        return 256
    return 128


def _pick_vmem_limit(B, f_in, TN):
    try:
        cap = int(pltpu.get_tpu_info().vmem_capacity_bytes)
    except Exception:
        cap = 128 * 1024 * 1024
    need = (B * f_in * 2              # x, bf16, single-buffered
            + 2 * f_in * TN * 2       # W^T tile, bf16, double-buffered
            + 2 * B * TN * 4          # out tile, f32, double-buffered
            + 8 * B * TN * 4          # elementwise temporaries headroom
            + (1 << 20))
    return max(32 * 1024 * 1024, min(2 * need, (cap * 3) // 4))


def lin_layer(x, wt, b2, g2, be2, f_out, seed, *, dropout_prob: float,
              use_batchnorm: bool):
    """x: (B, f_in).  wt/b2/g2/be2 from prepare_params().  Returns (B, f_out) f32."""
    B, f_in = x.shape
    f_in_w, f_out_pad = wt.shape
    assert f_in == f_in_w

    # Cast x to bf16 once here (not per feature tile inside the kernel).
    xb = x.astype(jnp.bfloat16)

    # Lane-aligned f_out tile; keep full B per tile so BN stats stay tile-local.
    # TODO(synk): if B grows so large that (B, TN) tiles blow VMEM, BN needs a
    # two-pass scheme over a B grid axis (batch statistics cannot be tiled naively).
    TN = _pick_tn(f_out_pad)
    grid = (f_out_pad // TN,)

    kernel = functools.partial(
        lin_layer_kernel,
        dropout_prob=float(dropout_prob),
        use_batchnorm=bool(use_batchnorm),
        f_out_pad=int(f_out_pad),
    )
    seed_arr = jnp.asarray([seed], dtype=jnp.int32)

    if use_batchnorm:
        params = (g2, be2)
    else:
        params = (b2,)

    def _run(single_buffer_x):
        x_kwargs = {}
        if single_buffer_x:
            x_kwargs["pipeline_mode"] = pl.Buffered(1)   # constant block index -> 1 buf
        in_specs = [
            pl.BlockSpec((B, f_in), lambda j, seed: (0, 0), **x_kwargs),   # x (full)
            pl.BlockSpec((f_in, TN), lambda j, seed: (0, j)),              # W^T tile
        ]
        for _ in params:                                                   # gamma/beta or bias
            in_specs.append(pl.BlockSpec((1, TN), lambda j, seed: (0, j)))

        call = pl.pallas_call(
            kernel,
            out_shape=jax.ShapeDtypeStruct((B, f_out_pad), jnp.float32),
            grid_spec=pltpu.PrefetchScalarGridSpec(
                num_scalar_prefetch=1,
                grid=grid,
                in_specs=in_specs,
                out_specs=pl.BlockSpec((B, TN), lambda j, seed: (0, j)),
            ),
            compiler_params=pltpu.CompilerParams(
                dimension_semantics=("parallel",),       # v7x dual-TC splits feature tiles
                vmem_limit_bytes=_pick_vmem_limit(B, f_in, TN),
            ),
        )
        return jax.block_until_ready(call(seed_arr, xb, wt, *params))

    try:
        out = _run(True)
    except Exception:
        # Fallback if this JAX build rejects pipeline_mode=pl.Buffered(1).
        out = _run(False)

    return out[:, :f_out]


def _reference_pre_dropout(x, wt, b2, g2, be2, f_out, use_batchnorm):
    """Pure-JAX reference mirroring the kernel's bf16 operands and one-pass BN stats."""
    y = jnp.dot(x.astype(jnp.bfloat16).astype(jnp.float32), wt.astype(jnp.float32))
    if use_batchnorm:
        mean = jnp.mean(y, axis=0, keepdims=True)
        var = jnp.mean(y * y, axis=0, keepdims=True) - mean * mean
        y = (y - mean) * (g2 / jnp.sqrt(var + BN_EPS)) + be2
    else:
        y = y + b2
    return jnp.maximum(y, 0.0)[:, :f_out]


if __name__ == "__main__":
    B, F_IN, F_OUT = 8, 32, 64
    DROPOUT_P = 0.1
    USE_BN = True

    key = jax.random.PRNGKey(0)
    kx, kw, kb = jax.random.split(key, 3)

    x = jax.random.normal(kx, (B, F_IN), dtype=jnp.float32)

    # torch nn.Linear default init: U(-1/sqrt(f_in), 1/sqrt(f_in)) for W and b
    bound = 1.0 / (F_IN ** 0.5)
    w = jax.random.uniform(kw, (F_OUT, F_IN), minval=-bound, maxval=bound,
                           dtype=jnp.float32)
    b = jax.random.uniform(kb, (F_OUT,), minval=-bound, maxval=bound,
                           dtype=jnp.float32)
    # BatchNorm1d default init: gamma=1, beta=0
    gamma = jnp.ones((F_OUT,), dtype=jnp.float32)
    beta = jnp.zeros((F_OUT,), dtype=jnp.float32)

    # One-time parameter preparation (transpose / pad / bf16 cast).
    wt, b2, g2, be2, f_out = prepare_params(w, b, gamma, beta)

    out = lin_layer(x, wt, b2, g2, be2, f_out, seed=1234,
                    dropout_prob=DROPOUT_P, use_batchnorm=USE_BN)
    out = jax.block_until_ready(out)

    # Sanity check: every output element equals either 0 (dropped) or
    # reference / (1 - p) (kept).  The dropout mask itself is hash-dependent.
    ref = _reference_pre_dropout(x, wt, b2, g2, be2, f_out, USE_BN)
    scaled = ref / (1.0 - DROPOUT_P)
    ok = jnp.minimum(jnp.abs(out), jnp.abs(out - scaled)) < 3e-3
    assert bool(jnp.all(ok)), "kernel output mismatch vs reference"
    assert out.shape == (B, F_OUT)

    print("KERNEL_OK")
</pallas_src>

<mosaic_0001>
module attributes {stable_mosaic.version = 11 : i64} {
  func.func @lin_layer_kernel(%arg0: i32, %arg1: memref<1xi32, #tpu.memory_space<smem>>, %arg2: memref<8x32xbf16, #tpu.memory_space<vmem>>, %arg3: memref<32x256xbf16, #tpu.memory_space<vmem>>, %arg4: memref<1x256xf32, #tpu.memory_space<vmem>>, %arg5: memref<1x256xf32, #tpu.memory_space<vmem>>, %arg6: memref<8x256xf32, #tpu.memory_space<vmem>>) attributes {dimension_semantics = [#tpu.dimension_semantics<parallel>], iteration_bounds = array<i64: 1>, scalar_prefetch = 1 : i64, scratch_operands = 0 : i64, tpu.core_type = #tpu.core_type<tc>, window_params = [{pipeline_mode = #tpu.pipeline_mode<synchronous>, transform_indices = @transform_0, window_bounds = array<i64: 8, 32>}, {transform_indices = @transform_1, window_bounds = array<i64: 32, 256>}, {transform_indices = @transform_2, window_bounds = array<i64: 1, 256>}, {transform_indices = @transform_3, window_bounds = array<i64: 1, 256>}, {transform_indices = @transform_4, window_bounds = array<i64: 8, 256>}]} {
    %c0 = arith.constant 0 : index
    %c0_0 = arith.constant 0 : index
    %0 = vector.load %arg2[%c0, %c0_0] : memref<8x32xbf16, #tpu.memory_space<vmem>>, vector<8x32xbf16>
    %c0_1 = arith.constant 0 : index
    %c0_2 = arith.constant 0 : index
    %1 = vector.load %arg3[%c0_1, %c0_2] : memref<32x256xbf16, #tpu.memory_space<vmem>>, vector<32x256xbf16>
    %cst = arith.constant dense<0.000000e+00> : vector<8x256xf32>
    %2 = tpu.matmul %0, %1, %cst {dimension_numbers = #tpu.dot_dimension_numbers<[1], [0], [0], [1], [0, 0, 1, 1], [], []>} : vector<8x32xbf16>, vector<32x256xbf16>, vector<8x256xf32> -> vector<8x256xf32>
    %cst_3 = arith.constant dense<0.000000e+00> : vector<256xf32>
    %3 = vector.multi_reduction <add>, %2, %cst_3 [0] : vector<8x256xf32> to vector<256xf32>
    %4 = vector.shape_cast %3 : vector<256xf32> to vector<1x256xf32>
    %cst_4 = arith.constant 8.000000e+00 : f32
    %5 = vector.broadcast %cst_4 : f32 to vector<1x256xf32>
    %6 = arith.divf %4, %5 : vector<1x256xf32>
    %7 = arith.mulf %2, %2 : vector<8x256xf32>
    %cst_5 = arith.constant dense<0.000000e+00> : vector<256xf32>
    %8 = vector.multi_reduction <add>, %7, %cst_5 [0] : vector<8x256xf32> to vector<256xf32>
    %9 = vector.shape_cast %8 : vector<256xf32> to vector<1x256xf32>
    %cst_6 = arith.constant 8.000000e+00 : f32
    %10 = vector.broadcast %cst_6 : f32 to vector<1x256xf32>
    %11 = arith.divf %9, %10 : vector<1x256xf32>
    %12 = arith.mulf %6, %6 : vector<1x256xf32>
    %13 = arith.subf %11, %12 : vector<1x256xf32>
    %c0_7 = arith.constant 0 : index
    %c0_8 = arith.constant 0 : index
    %14 = vector.load %arg4[%c0_7, %c0_8] : memref<1x256xf32, #tpu.memory_space<vmem>>, vector<1x256xf32>
    %cst_9 = arith.constant 9.99999974E-6 : f32
    %15 = vector.broadcast %cst_9 : f32 to vector<1x256xf32>
    %16 = arith.addf %13, %15 : vector<1x256xf32>
    %17 = math.rsqrt %16 : vector<1x256xf32>
    %18 = arith.mulf %14, %17 : vector<1x256xf32>
    %c0_10 = arith.constant 0 : index
    %c0_11 = arith.constant 0 : index
    %19 = vector.load %arg5[%c0_10, %c0_11] : memref<1x256xf32, #tpu.memory_space<vmem>>, vector<1x256xf32>
    %20 = arith.mulf %6, %18 : vector<1x256xf32>
    %21 = arith.subf %19, %20 : vector<1x256xf32>
    %22 = vector.broadcast %18 : vector<1x256xf32> to vector<8x256xf32>
    %23 = arith.mulf %2, %22 : vector<8x256xf32>
    %24 = vector.broadcast %21 : vector<1x256xf32> to vector<8x256xf32>
    %25 = arith.addf %23, %24 : vector<8x256xf32>
    %cst_12 = arith.constant 0.000000e+00 : f32
    %26 = vector.broadcast %cst_12 : f32 to vector<8x256xf32>
    %27 = arith.maximumf %25, %26 : vector<8x256xf32>
    %28 = tpu.iota {dimensions = array<i32: 0>} : vector<8x256xi32>
    %29 = tpu.iota {dimensions = array<i32: 1>} : vector<8x256xi32>
    %c256_i32 = arith.constant 256 : i32
    %30 = arith.muli %arg0, %c256_i32 : i32
    %31 = vector.broadcast %30 : i32 to vector<8x256xi32>
    %32 = arith.addi %29, %31 : vector<8x256xi32>
    %c256_i32_13 = arith.constant 256 : i32
    %33 = vector.broadcast %c256_i32_13 : i32 to vector<8x256xi32>
    %34 = arith.muli %28, %33 : vector<8x256xi32>
    %35 = arith.addi %34, %32 : vector<8x256xi32>
    %c0_14 = arith.constant 0 : index
    %36 = memref.load %arg1[%c0_14] : memref<1xi32, #tpu.memory_space<smem>>
    %c668265263_i32 = arith.constant 668265263 : i32
    %37 = arith.muli %36, %c668265263_i32 : i32
    %38 = vector.broadcast %37 : i32 to vector<8x256xi32>
    %39 = arith.addi %35, %38 : vector<8x256xi32>
    %c16_i32 = arith.constant 16 : i32
    %40 = vector.broadcast %c16_i32 : i32 to vector<8x256xi32>
    %41 = arith.shrui %39, %40 : vector<8x256xi32>
    %42 = arith.xori %39, %41 : vector<8x256xi32>
    %c73244475_i32 = arith.constant 73244475 : i32
    %43 = vector.broadcast %c73244475_i32 : i32 to vector<8x256xi32>
    %44 = arith.muli %42, %43 : vector<8x256xi32>
    %c13_i32 = arith.constant 13 : i32
    %45 = vector.broadcast %c13_i32 : i32 to vector<8x256xi32>
    %46 = arith.shrui %44, %45 : vector<8x256xi32>
    %47 = arith.xori %44, %46 : vector<8x256xi32>
    %c73244475_i32_15 = arith.constant 73244475 : i32
    %48 = vector.broadcast %c73244475_i32_15 : i32 to vector<8x256xi32>
    %49 = arith.muli %47, %48 : vector<8x256xi32>
    %c16_i32_16 = arith.constant 16 : i32
    %50 = vector.broadcast %c16_i32_16 : i32 to vector<8x256xi32>
    %51 = arith.shrui %49, %50 : vector<8x256xi32>
    %52 = arith.xori %49, %51 : vector<8x256xi32>
    %c16777215_i32 = arith.constant 16777215 : i32
    %53 = vector.broadcast %c16777215_i32 : i32 to vector<8x256xi32>
    %54 = arith.andi %52, %53 : vector<8x256xi32>
    %c1677722_i32 = arith.constant 1677722 : i32
    %55 = vector.broadcast %c1677722_i32 : i32 to vector<8x256xi32>
    %56 = arith.cmpi sge, %54, %55 : vector<8x256xi32>
    %cst_17 = arith.constant 1.11111116 : f32
    %57 = vector.broadcast %cst_17 : f32 to vector<8x256xf32>
    %58 = arith.mulf %27, %57 : vector<8x256xf32>
    %cst_18 = arith.constant 0.000000e+00 : f32
    %59 = vector.broadcast %cst_18 : f32 to vector<8x256xf32>
    %60 = arith.select %56, %58, %59 : vector<8x256xi1>, vector<8x256xf32>
    %c0_19 = arith.constant 0 : index
    %c0_20 = arith.constant 0 : index
    %61 = vector.load %arg6[%c0_19, %c0_20] : memref<8x256xf32, #tpu.memory_space<vmem>>, vector<8x256xf32>
    tpu.vector_store %arg6[%c0_19, %c0_20], %60 {strides = array<i32>} : memref<8x256xf32, #tpu.memory_space<vmem>>, vector<8x256xf32>,
    return
  }
  func.func @transform_0(%arg0: i32, %arg1: memref<1xi32, #tpu.memory_space<smem>>) -> (i32, i32) {
    %c0_i32 = arith.constant 0 : i32
    %c0_i32_0 = arith.constant 0 : i32
    %c0_i32_1 = arith.constant 0 : i32
    return %c0_i32, %c0_i32_0 : i32, i32
  }
  func.func @transform_1(%arg0: i32, %arg1: memref<1xi32, #tpu.memory_space<smem>>) -> (i32, i32) {
    %c0_i32 = arith.constant 0 : i32
    %c0_i32_0 = arith.constant 0 : i32
    return %c0_i32, %arg0 : i32, i32
  }
  func.func @transform_2(%arg0: i32, %arg1: memref<1xi32, #tpu.memory_space<smem>>) -> (i32, i32) {
    %c0_i32 = arith.constant 0 : i32
    %c0_i32_0 = arith.constant 0 : i32
    return %c0_i32, %arg0 : i32, i32
  }
  func.func @transform_3(%arg0: i32, %arg1: memref<1xi32, #tpu.memory_space<smem>>) -> (i32, i32) {
    %c0_i32 = arith.constant 0 : i32
    %c0_i32_0 = arith.constant 0 : i32
    return %c0_i32, %arg0 : i32, i32
  }
  func.func @transform_4(%arg0: i32, %arg1: memref<1xi32, #tpu.memory_space<smem>>) -> (i32, i32) {
    %c0_i32 = arith.constant 0 : i32
    %c0_i32_0 = arith.constant 0 : i32
    return %c0_i32, %arg0 : i32, i32
  }
}

module attributes {stable_mosaic.version = 11 : i64} {
  func.func @lin_layer_kernel(%arg0: i32, %arg1: memref<1xi32, #tpu.memory_space<smem>>, %arg2: memref<8x32xbf16, #tpu.memory_space<vmem>>, %arg3: memref<32x256xbf16, #tpu.memory_space<vmem>>, %arg4: memref<1x256xf32, #tpu.memory_space<vmem>>, %arg5: memref<1x256xf32, #tpu.memory_space<vmem>>, %arg6: memref<8x256xf32, #tpu.memory_space<vmem>>) attributes {dimension_semantics = [#tpu.dimension_semantics<parallel>], iteration_bounds = array<i64: 1>, scalar_prefetch = 1 : i64, scratch_operands = 0 : i64, tpu.core_type = #tpu.core_type<tc>, window_params = [{pipeline_mode = #tpu.pipeline_mode<synchronous>, transform_indices = @transform_0, window_bounds = array<i64: 8, 32>}, {transform_indices = @transform_1, window_bounds = array<i64: 32, 256>}, {transform_indices = @transform_2, window_bounds = array<i64: 1, 256>}, {transform_indices = @transform_3, window_bounds = array<i64: 1, 256>}, {transform_indices = @transform_4, window_bounds = array<i64: 8, 256>}]} {
    %c0 = arith.constant 0 : index
    %c0_0 = arith.constant 0 : index
    %0 = vector.load %arg2[%c0, %c0_0] : memref<8x32xbf16, #tpu.memory_space<vmem>>, vector<8x32xbf16>
    %c0_1 = arith.constant 0 : index
    %c0_2 = arith.constant 0 : index
    %1 = vector.load %arg3[%c0_1, %c0_2] : memref<32x256xbf16, #tpu.memory_space<vmem>>, vector<32x256xbf16>
    %cst = arith.constant dense<0.000000e+00> : vector<8x256xf32>
    %2 = tpu.matmul %0, %1, %cst {dimension_numbers = #tpu.dot_dimension_numbers<[1], [0], [0], [1], [0, 0, 1, 1], [], []>} : vector<8x32xbf16>, vector<32x256xbf16>, vector<8x256xf32> -> vector<8x256xf32>
    %cst_3 = arith.constant dense<0.000000e+00> : vector<256xf32>
    %3 = vector.multi_reduction <add>, %2, %cst_3 [0] : vector<8x256xf32> to vector<256xf32>
    %4 = vector.shape_cast %3 : vector<256xf32> to vector<1x256xf32>
    %cst_4 = arith.constant 8.000000e+00 : f32
    %5 = vector.broadcast %cst_4 : f32 to vector<1x256xf32>
    %6 = arith.divf %4, %5 : vector<1x256xf32>
    %7 = arith.mulf %2, %2 : vector<8x256xf32>
    %cst_5 = arith.constant dense<0.000000e+00> : vector<256xf32>
    %8 = vector.multi_reduction <add>, %7, %cst_5 [0] : vector<8x256xf32> to vector<256xf32>
    %9 = vector.shape_cast %8 : vector<256xf32> to vector<1x256xf32>
    %cst_6 = arith.constant 8.000000e+00 : f32
    %10 = vector.broadcast %cst_6 : f32 to vector<1x256xf32>
    %11 = arith.divf %9, %10 : vector<1x256xf32>
    %12 = arith.mulf %6, %6 : vector<1x256xf32>
    %13 = arith.subf %11, %12 : vector<1x256xf32>
    %c0_7 = arith.constant 0 : index
    %c0_8 = arith.constant 0 : index
    %14 = vector.load %arg4[%c0_7, %c0_8] : memref<1x256xf32, #tpu.memory_space<vmem>>, vector<1x256xf32>
    %cst_9 = arith.constant 9.99999974E-6 : f32
    %15 = vector.broadcast %cst_9 : f32 to vector<1x256xf32>
    %16 = arith.addf %13, %15 : vector<1x256xf32>
    %17 = math.rsqrt %16 : vector<1x256xf32>
    %18 = arith.mulf %14, %17 : vector<1x256xf32>
    %c0_10 = arith.constant 0 : index
    %c0_11 = arith.constant 0 : index
    %19 = vector.load %arg5[%c0_10, %c0_11] : memref<1x256xf32, #tpu.memory_space<vmem>>, vector<1x256xf32>
    %20 = arith.mulf %6, %18 : vector<1x256xf32>
    %21 = arith.subf %19, %20 : vector<1x256xf32>
    %22 = vector.broadcast %18 : vector<1x256xf32> to vector<8x256xf32>
    %23 = arith.mulf %2, %22 : vector<8x256xf32>
    %24 = vector.broadcast %21 : vector<1x256xf32> to vector<8x256xf32>
    %25 = arith.addf %23, %24 : vector<8x256xf32>
    %cst_12 = arith.constant 0.000000e+00 : f32
    %26 = vector.broadcast %cst_12 : f32 to vector<8x256xf32>
    %27 = arith.maximumf %25, %26 : vector<8x256xf32>
    %28 = tpu.iota {dimensions = array<i32: 0>} : vector<8x256xi32>
    %29 = tpu.iota {dimensions = array<i32: 1>} : vector<8x256xi32>
    %c256_i32 = arith.constant 256 : i32
    %30 = arith.muli %arg0, %c256_i32 : i32
    %31 = vector.broadcast %30 : i32 to vector<8x256xi32>
    %32 = arith.addi %29, %31 : vector<8x256xi32>
    %c256_i32_13 = arith.constant 256 : i32
    %33 = vector.broadcast %c256_i32_13 : i32 to vector<8x256xi32>
    %34 = arith.muli %28, %33 : vector<8x256xi32>
    %35 = arith.addi %34, %32 : vector<8x256xi32>
    %c0_14 = arith.constant 0 : index
    %36 = memref.load %arg1[%c0_14] : memref<1xi32, #tpu.memory_space<smem>>
    %c668265263_i32 = arith.constant 668265263 : i32
    %37 = arith.muli %36, %c668265263_i32 : i32
    %38 = vector.broadcast %37 : i32 to vector<8x256xi32>
    %39 = arith.addi %35, %38 : vector<8x256xi32>
    %c16_i32 = arith.constant 16 : i32
    %40 = vector.broadcast %c16_i32 : i32 to vector<8x256xi32>
    %41 = arith.shrui %39, %40 : vector<8x256xi32>
    %42 = arith.xori %39, %41 : vector<8x256xi32>
    %c73244475_i32 = arith.constant 73244475 : i32
    %43 = vector.broadcast %c73244475_i32 : i32 to vector<8x256xi32>
    %44 = arith.muli %42, %43 : vector<8x256xi32>
    %c13_i32 = arith.constant 13 : i32
    %45 = vector.broadcast %c13_i32 : i32 to vector<8x256xi32>
    %46 = arith.shrui %44, %45 : vector<8x256xi32>
    %47 = arith.xori %44, %46 : vector<8x256xi32>
    %c73244475_i32_15 = arith.constant 73244475 : i32
    %48 = vector.broadcast %c73244475_i32_15 : i32 to vector<8x256xi32>
    %49 = arith.muli %47, %48 : vector<8x256xi32>
    %c16_i32_16 = arith.constant 16 : i32
    %50 = vector.broadcast %c16_i32_16 : i32 to vector<8x256xi32>
    %51 = arith.shrui %49, %50 : vector<8x256xi32>
    %52 = arith.xori %49, %51 : vector<8x256xi32>
    %c16777215_i32 = arith.constant 16777215 : i32
    %53 = vector.broadcast %c16777215_i32 : i32 to vector<8x256xi32>
    %54 = arith.andi %52, %53 : vector<8x256xi32>
    %c1677722_i32 = arith.constant 1677722 : i32
    %55 = vector.broadcast %c1677722_i32 : i32 to vector<8x256xi32>
    %56 = arith.cmpi sge, %54, %55 : vector<8x256xi32>
    %cst_17 = arith.constant 1.11111116 : f32
    %57 = vector.broadcast %cst_17 : f32 to vector<8x256xf32>
    %58 = arith.mulf %27, %57 : vector<8x256xf32>
    %cst_18 = arith.constant 0.000000e+00 : f32
    %59 = vector.broadcast %cst_18 : f32 to vector<8x256xf32>
    %60 = arith.select %56, %58, %59 : vector<8x256xi1>, vector<8x256xf32>
    %c0_19 = arith.constant 0 : index
    %c0_20 = arith.constant 0 : index
    %61 = vector.load %arg6[%c0_19, %c0_20] : memref<8x256xf32, #tpu.memory_space<vmem>>, vector<8x256xf32>
    tpu.vector_store %arg6[%c0_19, %c0_20], %60 {strides = array<i32>} : memref<8x256xf32, #tpu.memory_space<vmem>>, vector<8x256xf32>,
    return
  }
  func.func @transform_0(%arg0: i32, %arg1: memref<1xi32, #tpu.memory_space<smem>>) -> (i32, i32) {
    %c0_i32 = arith.constant 0 : i32
    %c0_i32_0 = arith.constant 0 : i32
    %c0_i32_1 = arith.constant 0 : i32
    return %c0_i32, %c0_i32_0 : i32, i32
  }
  func.func @transform_1(%arg0: i32, %arg1: memref<1xi32, #tpu.memory_space<smem>>) -> (i32, i32) {
    %c0_i32 = arith.constant 0 : i32
    %c0_i32_0 = arith.constant 0 : i32
    return %c0_i32, %arg0 : i32, i32
  }
  func.func @transform_2(%arg0: i32, %arg1: memref<1xi32, #tpu.memory_space<smem>>) -> (i32, i32) {
    %c0_i32 = arith.constant 0 : i32
    %c0_i32_0 = arith.constant 0 : i32
    return %c0_i32, %arg0 : i32, i32
  }
  func.func @transform_3(%arg0: i32, %arg1: memref<1xi32, #tpu.memory_space<smem>>) -> (i32, i32) {
    %c0_i32 = arith.constant 0 : i32
    %c0_i32_0 = arith.constant 0 : i32
    return %c0_i32, %arg0 : i32, i32
  }
  func.func @transform_4(%arg0: i32, %arg1: memref<1xi32, #tpu.memory_space<smem>>) -> (i32, i32) {
    %c0_i32 = arith.constant 0 : i32
    %c0_i32_0 = arith.constant 0 : i32
    return %c0_i32, %arg0 : i32, i32
  }
}

</mosaic_0001>

<llo_original>
// kernel: tpu_custom_call.1
$region0: #{tpu_custom_call.1}
  #allocation0 [shape = 'u32[]', space=smem, size = 0x4, offset = 0x4, fixed_abs, tag = 'smem constant byte address 0x4 - core index']
  #allocation1 [shape = 'u32[144,128]{1,0:T(1,128)}', space=vmem, size = 0x12000, scoped, tag = 'internal scratch']
  #allocation2 [shape = 's32[1]{0}', space=sflag, size = 0x4, scoped, tag = 'scoped memory for tpu_custom_call.1']
  #allocation3 [shape = 's32[1]{0:T(128)S(6)}', space=smem, size = 0x200, scoped, tag = 'prefetched SMEM operand 0']
  %s0 = inlined_call_operand.<no memory space> [shape: s32[1], index: 0, kind: input, shape index: {}]
  %s1 = inlined_call_operand.hbm [shape: bf16[8,32], index: 1, kind: input, shape index: {}]
  %s2 = inlined_call_operand.hbm [shape: bf16[32,256], index: 2, kind: input, shape index: {}]
  %s3 = inlined_call_operand.vmem [shape: f32[1,256], index: 3, kind: input, shape index: {}]
  %s4 = inlined_call_operand.vmem [shape: f32[1,256], index: 4, kind: input, shape index: {}]
  %s5 = inlined_call_operand.hbm [shape: f32[8,256], index: 5, kind: output, shape index: {}]
  %s6 = sld [smem:[#allocation0]]
  $region34: #{tpu_custom_call.1} parent=0
    _
  %s8 = ssub.s32 1, %s6
  %s9 = scalar_select 0, %s8, %s6
  %10 = sst [smem:[#allocation3]] %s0
  $region1: #{tpu_custom_call.1} parent=0
    #allocation4 [shape = 'u8[2048]{0}', space=vmem, size = 0x800, scoped, tag = 'input window, operand 1, single buffered']
    #allocation5 [shape = 's32[1]{0}', space=sflag, size = 0x4, scoped, tag = 'scoped memory for tpu_custom_call.1']
    #allocation6 [shape = 's32[1]{0}', space=sflag, size = 0x4, scoped, tag = 'scoped memory for tpu_custom_call.1']
    #allocation7 [shape = 'u8[16384]{0}', space=vmem, size = 0x4000, scoped, tag = 'input window, operand 2, single buffered']
    #allocation8 [shape = 's32[1]{0}', space=sflag, size = 0x4, scoped, tag = 'scoped memory for tpu_custom_call.1']
    #allocation9 [shape = 'u8[8192]{0}', space=vmem, size = 0x2000, scoped, tag = 'output window, operand 0, single buffered']
    %11 = vsyncpa [#allocation5], 0
    %12 = vsyncpa [#allocation8], 0
    %13 = vsyncpa [#allocation6], 0
    // Predicated region
    $region2: #{tpu_custom_call.1} parent=1 // pred_check
      _
    $region3: #{tpu_custom_call.1} parent=1 // pred_check_branch
      %15 = sbr.rel (0) target = $region5
    $region4: #{tpu_custom_call.1} parent=1 // pred_region
      %s17 = ssub.s32 64, 64
      %18 = vsyncadd [#allocation5], %s17
      %s20 = sshll.u32 [#allocation4], 4
      %s21 = int_to_ptr.vmem [resolvable:$true] %s20
      %23 = dma.hbm_to_vmem [thread:$0]  %s1, 64, %s21, [#allocation5]
    $region5: #{tpu_custom_call.1} parent=1 // pred_fallthru
      _
    // Predicated region
    $region6: #{tpu_custom_call.1} parent=1 // pred_check
      _
    $region7: #{tpu_custom_call.1} parent=1 // pred_check_branch
      %25 = sbr.rel (0) target = $region9
    $region8: #{tpu_custom_call.1} parent=1 // pred_region
      %s27 = ssub.s32 512, 512
      %28 = vsyncadd [#allocation8], %s27
      %s29 = sshll.u32 [#allocation7], 4
      %s30 = int_to_ptr.vmem [resolvable:$true] %s29
      %35 = dma.hbm_to_vmem [thread:$0]  %s2, 512, %s30, [#allocation8], 128, 128, 8
    $region9: #{tpu_custom_call.1} parent=1 // pred_fallthru
      _
    // Predicated region
    $region10: #{tpu_custom_call.1} parent=1 // pred_check
      _
    $region11: #{tpu_custom_call.1} parent=1 // pred_check_branch
      %37 = sbr.rel (0) target = $region13
    $region12: #{tpu_custom_call.1} parent=1 // pred_region
      _
    $region13: #{tpu_custom_call.1} parent=1 // pred_fallthru
      _
    // Predicated region
    $region14: #{tpu_custom_call.1} parent=1 // pred_check
      _
    $region15: #{tpu_custom_call.1} parent=1 // pred_check_branch
      %39 = sbr.rel (0) target = $region17
    $region16: #{tpu_custom_call.1} parent=1 // pred_region
      _
    $region17: #{tpu_custom_call.1} parent=1 // pred_fallthru
      _
    // Predicated region
    $region18: #{tpu_custom_call.1} parent=1 // pred_check
      _
    $region19: #{tpu_custom_call.1} parent=1 // pred_check_branch
      %41 = sbr.rel (0) target = $region21
    $region20: #{tpu_custom_call.1} parent=1 // pred_region
      %42 = dma.done [#allocation5], 64
    $region21: #{tpu_custom_call.1} parent=1 // pred_fallthru
      _
    // Predicated region
    $region22: #{tpu_custom_call.1} parent=1 // pred_check
      _
    $region23: #{tpu_custom_call.1} parent=1 // pred_check_branch
      %44 = sbr.rel (0) target = $region25
    $region24: #{tpu_custom_call.1} parent=1 // pred_region
      %45 = dma.done [#allocation8], 512
    $region25: #{tpu_custom_call.1} parent=1 // pred_fallthru
      _
    %v47 = vld [vmem:[#allocation4] sm:$0xf]
    %v48 = vld [vmem:[#allocation7] sm:$0xff]
    %v49 = vld [vmem:[#allocation7 + $0x8] sm:$0xff]
    %v50 = vld [vmem:[#allocation7 + $0x10] sm:$0xff]
    %v51 = vld [vmem:[#allocation7 + $0x18] sm:$0xff]
    %v56 = vunpack.c.l.b16 %v48
    %v57 = vunpack.c.h.b16 %v48
    %v58 = vunpack.c.l.b16 %v49
    %v59 = vunpack.c.h.b16 %v49
    %v60 = vunpack.c.l.b16 %v50
    %v61 = vunpack.c.h.b16 %v50
    %v62 = vunpack.c.l.b16 %v51
    %v63 = vunpack.c.h.b16 %v51
    %v64 = vpack.c.b16 %v58, %v56
    %v65 = vpack.c.b16 %v59, %v57
    %v66 = vpack.c.b16 %v62, %v60
    %v67 = vpack.c.b16 %v63, %v61
    %vm72 = vcmask 261120
    %v74 = vsel %vm72, %v47, 0
    %76 = vmatprep.subr.bf16.mxu0 %v65
    %77 = vmatpush1.bf16.msra.mxu0 %v64
    %78 = vmatprep.subr.bf16.mxu0 %v67
    %79 = vmatpush1.bf16.msra.mxu0 %v66
    %80 = vmatprep.subr.bf16.mxu0 0
    %81 = vmatpush1.bf16.msra.mxu0 0
    %82 = vmatprep.subr.bf16.mxu0 0
    %83 = vmatpush1.bf16.msra.mxu0 0
    %84 = vmatprep.subr.bf16.mxu0 0
    %85 = vmatpush1.bf16.msra.mxu0 0
    %86 = vmatprep.subr.bf16.mxu0 0
    %87 = vmatpush1.bf16.msra.mxu0 0
    %88 = vmatprep.subr.bf16.mxu0 0
    %89 = vmatpush1.bf16.msra.mxu0 0
    %90 = vmatprep.subr.bf16.mxu0 0
    %91 = vmatpush1.bf16.msra.mxu0 0
    %92 = vmatprep.subr.bf16.mxu0 0
    %93 = vmatpush1.bf16.msra.mxu0 0
    %94 = vmatprep.subr.bf16.mxu0 0
    %95 = vmatpush1.bf16.msra.mxu0 0
    %96 = vmatprep.subr.bf16.mxu0 0
    %97 = vmatpush1.bf16.msra.mxu0 0
    %98 = vmatprep.subr.bf16.mxu0 0
    %99 = vmatpush1.bf16.msra.mxu0 0
    %100 = vmatprep.subr.bf16.mxu0 0
    %101 = vmatpush1.bf16.msra.mxu0 0
    %102 = vmatprep.subr.bf16.mxu0 0
    %103 = vmatpush1.bf16.msra.mxu0 0
    %104 = vmatprep.subr.bf16.mxu0 0
    %105 = vmatpush1.bf16.msra.mxu0 0
    %106 = vmatprep.subr.bf16.mxu0 0
    %107 = vmatpush1.bf16.msra.mxu0 0
    %108 = vmatprep.mubr.bf16.mxu0 0
    %109 = vmatmul.mubr.bf16.gmra.mrb[0].mxu0 %v74
    %v110 = vpop.f32.mrb[0].mxu0
    %v111 = vadd.f32 0.0, %v110
    %v112 = vpop.f32.mrb[0].mxu0
    %v113 = vadd.f32 0.0, %v112
    %v114 = vpop.f32.mrb[0].mxu0
    %v115 = vpop.f32.mrb[0].mxu0
    %116 = vdwg.mxu0
    %v117 = vrot.slane %v111, 4
    %v118 = vadd.f32 %v111, %v117
    %v119 = vrot.slane %v118, 2
    %v120 = vadd.f32 %v118, %v119
    %v121 = vrot.slane %v120, 1
    %v122 = vadd.f32 %v120, %v121
    %v123 = vrot.slane %v113, 4
    %v124 = vadd.f32 %v113, %v123
    %v125 = vrot.slane %v124, 2
    %v126 = vadd.f32 %v124, %v125
    %v127 = vrot.slane %v126, 1
    %v128 = vadd.f32 %v126, %v127
    %v129 = vrcp.pop 8.0
    %v130 = vmul.f32 %v122, %v129
    %v131 = vmul.f32 %v128, %v129
    %v132 = vmul.f32 %v111, %v111
    %v133 = vmul.f32 %v113, %v113
    %v134 = vrot.slane %v132, 4
    %v135 = vadd.f32 %v132, %v134
    %v136 = vrot.slane %v135, 2
    %v137 = vadd.f32 %v135, %v136
    %v138 = vrot.slane %v137, 1
    %v139 = vadd.f32 %v137, %v138
    %v140 = vrot.slane %v133, 4
    %v141 = vadd.f32 %v133, %v140
    %v142 = vrot.slane %v141, 2
    %v143 = vadd.f32 %v141, %v142
    %v144 = vrot.slane %v143, 1
    %v145 = vadd.f32 %v143, %v144
    %v146 = vmul.f32 %v139, %v129
    %v147 = vmul.f32 %v145, %v129
    %v148 = vmul.f32 %v130, %v130
    %v149 = vmul.f32 %v131, %v131
    %v150 = vsub.f32 %v146, %v148
    %v151 = vsub.f32 %v147, %v149
    %v152 = vld [vmem:[%s3] sm:$0x3]
    %v153 = vadd.f32 %v150, 1e-05
    %v154 = vadd.f32 %v151, 1e-05
    %v155 = vrsqrt.pop %v153
    %v156 = vrsqrt.pop %v154
    %v159 = vcombine.low %v155, %v156
    %v161 = vunpack.c.l.s4 1966171168
    %v162 = vunpack.c.0.s8 %v161
    %v163 = vlaneseq
    %v164 = vshrl.u32 %v163, 7
    %v165 = vsub.s32 %v162, %v164
    %v166 = vrot.slane %v159, %v165
    %v168 = vunpack.c.l.s4 1966171168
    %v169 = vunpack.c.0.s8 %v168
    %v170 = vlaneseq
    %v171 = vshrl.u32 %v170, 7
    %v172 = vsub.s32 %v169, %v171
    %v173 = vrot.slane %v166, %v172
    %v175 = vmul.f32 %v152, %v173
    %v176 = vld [vmem:[%s4] sm:$0x3]
    %v178 = vlaneseq
    %v179 = vshrl.u32 %v178, 7
    %v180 = vsub.s32 0, %v179
    %v181 = vrot.slane %v175, %v180
    %v182 = vlaneseq
    %v183 = vshrl.u32 %v182, 7
    %v184 = vsub.s32 1, %v183
    %v185 = vrot.slane %v175, %v184
    %v188 = vmul.f32 %v130, %v181
    %v189 = vmul.f32 %v131, %v185
    %v192 = vcombine.low %v188, %v189
    %v194 = vunpack.c.l.s4 1966171168
    %v195 = vunpack.c.0.s8 %v194
    %v196 = vlaneseq
    %v197 = vshrl.u32 %v196, 7
    %v198 = vsub.s32 %v195, %v197
    %v199 = vrot.slane %v192, %v198
    %v201 = vunpack.c.l.s4 1966171168
    %v202 = vunpack.c.0.s8 %v201
    %v203 = vlaneseq
    %v204 = vshrl.u32 %v203, 7
    %v205 = vsub.s32 %v202, %v204
    %v206 = vrot.slane %v199, %v205
    %v208 = vsub.f32 %v176, %v206
    %v209 = vmul.f32 %v111, %v181
    %v210 = vmul.f32 %v113, %v185
    %v212 = vlaneseq
    %v213 = vshrl.u32 %v212, 7
    %v214 = vsub.s32 0, %v213
    %v215 = vrot.slane %v208, %v214
    %v216 = vlaneseq
    %v217 = vshrl.u32 %v216, 7
    %v218 = vsub.s32 1, %v217
    %v219 = vrot.slane %v208, %v218
    %v222 = vadd.f32 %v209, %v215
    %v223 = vadd.f32 %v210, %v219
    %v224 = vmax.f32 %v222, 0.0
    %v225 = vmax.f32 %v223, 0.0
    %v226 = vlaneseq
    %v227 = vshrl.u32 %v226, 7
    %v228 = vlaneseq
    %v229 = vand.u32 %v228, 127
    %v230 = vadd.s32 %v229, 128
    %s231 = smul.u32 0, 256
    %v232 = vstv %s231
    %v233 = vadd.s32 %v229, %v232
    %v234 = vadd.s32 %v230, %v232
    %v235 = vmul.u32 %v227, 256
    %v236 = vadd.s32 %v235, %v233
    %v237 = vadd.s32 %v235, %v234
    %s238 = sld [smem:[#allocation3]]
    %s239 = smul.u32 %s238, 668265263
    %v240 = vstv %s239
    %v241 = vadd.s32 %v236, %v240
    %v242 = vadd.s32 %v237, %v240
    %v243 = vshrl.u32 %v241, 16
    %v244 = vshrl.u32 %v242, 16
    %v245 = vxor.u32 %v241, %v243
    %v246 = vxor.u32 %v242, %v244
    %v247 = vmul.u32 %v245, 73244475
    %v248 = vmul.u32 %v246, 73244475
    %v249 = vshrl.u32 %v247, 13
    %v250 = vshrl.u32 %v248, 13
    %v251 = vxor.u32 %v247, %v249
    %v252 = vxor.u32 %v248, %v250
    %v253 = vmul.u32 %v251, 73244475
    %v254 = vmul.u32 %v252, 73244475
    %v255 = vshrl.u32 %v253, 16
    %v256 = vshrl.u32 %v254, 16
    %v257 = vxor.u32 %v253, %v255
    %v258 = vxor.u32 %v254, %v256
    %v259 = vand.u32 %v257, 16777215
    %v260 = vand.u32 %v258, 16777215
    %vm261 = vcmp.ge.s32.totalorder %v259, 1677722
    %vm262 = vcmp.ge.s32.totalorder %v260, 1677722
    %v263 = vmul.f32 %v224, 1.1111112
    %v264 = vmul.f32 %v225, 1.1111112
    %v265 = vsel %vm261, %v263, 0.0
    %v266 = vsel %vm262, %v264, 0.0
    %267 = vst [vmem:[#allocation9] sm:$0xff] %v265
    %268 = vst [vmem:[#allocation9 + $0x8] sm:$0xff] %v266
    // Predicated region
    $region26: #{tpu_custom_call.1} parent=1 // pred_check
      _
    $region27: #{tpu_custom_call.1} parent=1 // pred_check_branch
      %270 = sbr.rel (0) target = $region29
    $region28: #{tpu_custom_call.1} parent=1 // pred_region
      %s272 = ssub.s32 256, 256
      %273 = vsyncadd [#allocation6], %s272
      %s275 = sshll.u32 [#allocation9], 4
      %s276 = int_to_ptr.vmem [resolvable:$true] %s275
      %278 = dma.vmem_to_hbm [thread:$0]  %s276, 256, %s5, [#allocation6]
    $region29: #{tpu_custom_call.1} parent=1 // pred_fallthru
      _
    // Predicated region
    $region30: #{tpu_custom_call.1} parent=1 // pred_check
      _
    $region31: #{tpu_custom_call.1} parent=1 // pred_check_branch
      %280 = sbr.rel (0) target = $region33
    $region32: #{tpu_custom_call.1} parent=1 // pred_region
      %281 = dma.done [#allocation6], 256
    $region33: #{tpu_custom_call.1} parent=1 // pred_fallthru
      _
    %282 = vsyncpa [#allocation5], 1
    %283 = vsyncpa [#allocation8], 1
    %284 = vsyncpa [#allocation6], 1

// kernel: tpu_custom_call.1
$region0: #{tpu_custom_call.1}
  #allocation0 [shape = 'u32[]', space=smem, size = 0x4, offset = 0x4, fixed_abs, tag = 'smem constant byte address 0x4 - core index']
  #allocation1 [shape = 'u32[144,128]{1,0:T(1,128)}', space=vmem, size = 0x12000, scoped, tag = 'internal scratch']
  #allocation2 [shape = 's32[1]{0}', space=sflag, size = 0x4, scoped, tag = 'scoped memory for tpu_custom_call.1']
  #allocation3 [shape = 's32[1]{0:T(128)S(6)}', space=smem, size = 0x200, scoped, tag = 'prefetched SMEM operand 0']
  %s0 = inlined_call_operand.<no memory space> [shape: s32[1], index: 0, kind: input, shape index: {}]
  %s1 = inlined_call_operand.hbm [shape: bf16[8,32], index: 1, kind: input, shape index: {}]
  %s2 = inlined_call_operand.hbm [shape: bf16[32,256], index: 2, kind: input, shape index: {}]
  %s3 = inlined_call_operand.vmem [shape: f32[1,256], index: 3, kind: input, shape index: {}]
  %s4 = inlined_call_operand.vmem [shape: f32[1,256], index: 4, kind: input, shape index: {}]
  %s5 = inlined_call_operand.hbm [shape: f32[8,256], index: 5, kind: output, shape index: {}]
  %s6 = sld [smem:[#allocation0]]
  $region34: #{tpu_custom_call.1} parent=0
    _
  %s8 = ssub.s32 1, %s6
  %s9 = scalar_select 0, %s8, %s6
  %10 = sst [smem:[#allocation3]] %s0
  $region1: #{tpu_custom_call.1} parent=0
    #allocation4 [shape = 'u8[2048]{0}', space=vmem, size = 0x800, scoped, tag = 'input window, operand 1, single buffered']
    #allocation5 [shape = 's32[1]{0}', space=sflag, size = 0x4, scoped, tag = 'scoped memory for tpu_custom_call.1']
    #allocation6 [shape = 's32[1]{0}', space=sflag, size = 0x4, scoped, tag = 'scoped memory for tpu_custom_call.1']
    #allocation7 [shape = 'u8[16384]{0}', space=vmem, size = 0x4000, scoped, tag = 'input window, operand 2, single buffered']
    #allocation8 [shape = 's32[1]{0}', space=sflag, size = 0x4, scoped, tag = 'scoped memory for tpu_custom_call.1']
    #allocation9 [shape = 'u8[8192]{0}', space=vmem, size = 0x2000, scoped, tag = 'output window, operand 0, single buffered']
    %11 = vsyncpa [#allocation5], 0
    %12 = vsyncpa [#allocation8], 0
    %13 = vsyncpa [#allocation6], 0
    // Predicated region
    $region2: #{tpu_custom_call.1} parent=1 // pred_check
      _
    $region3: #{tpu_custom_call.1} parent=1 // pred_check_branch
      %15 = sbr.rel (0) target = $region5
    $region4: #{tpu_custom_call.1} parent=1 // pred_region
      %s17 = ssub.s32 64, 64
      %18 = vsyncadd [#allocation5], %s17
      %s20 = sshll.u32 [#allocation4], 4
      %s21 = int_to_ptr.vmem [resolvable:$true] %s20
      %23 = dma.hbm_to_vmem [thread:$0]  %s1, 64, %s21, [#allocation5]
    $region5: #{tpu_custom_call.1} parent=1 // pred_fallthru
      _
    // Predicated region
    $region6: #{tpu_custom_call.1} parent=1 // pred_check
      _
    $region7: #{tpu_custom_call.1} parent=1 // pred_check_branch
      %25 = sbr.rel (0) target = $region9
    $region8: #{tpu_custom_call.1} parent=1 // pred_region
      %s27 = ssub.s32 512, 512
      %28 = vsyncadd [#allocation8], %s27
      %s29 = sshll.u32 [#allocation7], 4
      %s30 = int_to_ptr.vmem [resolvable:$true] %s29
      %35 = dma.hbm_to_vmem [thread:$0]  %s2, 512, %s30, [#allocation8], 128, 128, 8
    $region9: #{tpu_custom_call.1} parent=1 // pred_fallthru
      _
    // Predicated region
    $region10: #{tpu_custom_call.1} parent=1 // pred_check
      _
    $region11: #{tpu_custom_call.1} parent=1 // pred_check_branch
      %37 = sbr.rel (0) target = $region13
    $region12: #{tpu_custom_call.1} parent=1 // pred_region
      _
    $region13: #{tpu_custom_call.1} parent=1 // pred_fallthru
      _
    // Predicated region
    $region14: #{tpu_custom_call.1} parent=1 // pred_check
      _
    $region15: #{tpu_custom_call.1} parent=1 // pred_check_branch
      %39 = sbr.rel (0) target = $region17
    $region16: #{tpu_custom_call.1} parent=1 // pred_region
      _
    $region17: #{tpu_custom_call.1} parent=1 // pred_fallthru
      _
    // Predicated region
    $region18: #{tpu_custom_call.1} parent=1 // pred_check
      _
    $region19: #{tpu_custom_call.1} parent=1 // pred_check_branch
      %41 = sbr.rel (0) target = $region21
    $region20: #{tpu_custom_call.1} parent=1 // pred_region
      %42 = dma.done [#allocation5], 64
    $region21: #{tpu_custom_call.1} parent=1 // pred_fallthru
      _
    // Predicated region
    $region22: #{tpu_custom_call.1} parent=1 // pred_check
      _
    $region23: #{tpu_custom_call.1} parent=1 // pred_check_branch
      %44 = sbr.rel (0) target = $region25
    $region24: #{tpu_custom_call.1} parent=1 // pred_region
      %45 = dma.done [#allocation8], 512
    $region25: #{tpu_custom_call.1} parent=1 // pred_fallthru
      _
    %v47 = vld [vmem:[#allocation4] sm:$0xf]
    %v48 = vld [vmem:[#allocation7] sm:$0xff]
    %v49 = vld [vmem:[#allocation7 + $0x8] sm:$0xff]
    %v50 = vld [vmem:[#allocation7 + $0x10] sm:$0xff]
    %v51 = vld [vmem:[#allocation7 + $0x18] sm:$0xff]
    %v56 = vunpack.c.l.b16 %v48
    %v57 = vunpack.c.h.b16 %v48
    %v58 = vunpack.c.l.b16 %v49
    %v59 = vunpack.c.h.b16 %v49
    %v60 = vunpack.c.l.b16 %v50
    %v61 = vunpack.c.h.b16 %v50
    %v62 = vunpack.c.l.b16 %v51
    %v63 = vunpack.c.h.b16 %v51
    %v64 = vpack.c.b16 %v58, %v56
    %v65 = vpack.c.b16 %v59, %v57
    %v66 = vpack.c.b16 %v62, %v60
    %v67 = vpack.c.b16 %v63, %v61
    %vm72 = vcmask 261120
    %v74 = vsel %vm72, %v47, 0
    %76 = vmatprep.subr.bf16.mxu0 %v65
    %77 = vmatpush1.bf16.msra.mxu0 %v64
    %78 = vmatprep.subr.bf16.mxu0 %v67
    %79 = vmatpush1.bf16.msra.mxu0 %v66
    %80 = vmatprep.subr.bf16.mxu0 0
    %81 = vmatpush1.bf16.msra.mxu0 0
    %82 = vmatprep.subr.bf16.mxu0 0
    %83 = vmatpush1.bf16.msra.mxu0 0
    %84 = vmatprep.subr.bf16.mxu0 0
    %85 = vmatpush1.bf16.msra.mxu0 0
    %86 = vmatprep.subr.bf16.mxu0 0
    %87 = vmatpush1.bf16.msra.mxu0 0
    %88 = vmatprep.subr.bf16.mxu0 0
    %89 = vmatpush1.bf16.msra.mxu0 0
    %90 = vmatprep.subr.bf16.mxu0 0
    %91 = vmatpush1.bf16.msra.mxu0 0
    %92 = vmatprep.subr.bf16.mxu0 0
    %93 = vmatpush1.bf16.msra.mxu0 0
    %94 = vmatprep.subr.bf16.mxu0 0
    %95 = vmatpush1.bf16.msra.mxu0 0
    %96 = vmatprep.subr.bf16.mxu0 0
    %97 = vmatpush1.bf16.msra.mxu0 0
    %98 = vmatprep.subr.bf16.mxu0 0
    %99 = vmatpush1.bf16.msra.mxu0 0
    %100 = vmatprep.subr.bf16.mxu0 0
    %101 = vmatpush1.bf16.msra.mxu0 0
    %102 = vmatprep.subr.bf16.mxu0 0
    %103 = vmatpush1.bf16.msra.mxu0 0
    %104 = vmatprep.subr.bf16.mxu0 0
    %105 = vmatpush1.bf16.msra.mxu0 0
    %106 = vmatprep.subr.bf16.mxu0 0
    %107 = vmatpush1.bf16.msra.mxu0 0
    %108 = vmatprep.mubr.bf16.mxu0 0
    %109 = vmatmul.mubr.bf16.gmra.mrb[0].mxu0 %v74
    %v110 = vpop.f32.mrb[0].mxu0
    %v111 = vadd.f32 0.0, %v110
    %v112 = vpop.f32.mrb[0].mxu0
    %v113 = vadd.f32 0.0, %v112
    %v114 = vpop.f32.mrb[0].mxu0
    %v115 = vpop.f32.mrb[0].mxu0
    %116 = vdwg.mxu0
    %v117 = vrot.slane %v111, 4
    %v118 = vadd.f32 %v111, %v117
    %v119 = vrot.slane %v118, 2
    %v120 = vadd.f32 %v118, %v119
    %v121 = vrot.slane %v120, 1
    %v122 = vadd.f32 %v120, %v121
    %v123 = vrot.slane %v113, 4
    %v124 = vadd.f32 %v113, %v123
    %v125 = vrot.slane %v124, 2
    %v126 = vadd.f32 %v124, %v125
    %v127 = vrot.slane %v126, 1
    %v128 = vadd.f32 %v126, %v127
    %v129 = vrcp.pop 8.0
    %v130 = vmul.f32 %v122, %v129
    %v131 = vmul.f32 %v128, %v129
    %v132 = vmul.f32 %v111, %v111
    %v133 = vmul.f32 %v113, %v113
    %v134 = vrot.slane %v132, 4
    %v135 = vadd.f32 %v132, %v134
    %v136 = vrot.slane %v135, 2
    %v137 = vadd.f32 %v135, %v136
    %v138 = vrot.slane %v137, 1
    %v139 = vadd.f32 %v137, %v138
    %v140 = vrot.slane %v133, 4
    %v141 = vadd.f32 %v133, %v140
    %v142 = vrot.slane %v141, 2
    %v143 = vadd.f32 %v141, %v142
    %v144 = vrot.slane %v143, 1
    %v145 = vadd.f32 %v143, %v144
    %v146 = vmul.f32 %v139, %v129
    %v147 = vmul.f32 %v145, %v129
    %v148 = vmul.f32 %v130, %v130
    %v149 = vmul.f32 %v131, %v131
    %v150 = vsub.f32 %v146, %v148
    %v151 = vsub.f32 %v147, %v149
    %v152 = vld [vmem:[%s3] sm:$0x3]
    %v153 = vadd.f32 %v150, 1e-05
    %v154 = vadd.f32 %v151, 1e-05
    %v155 = vrsqrt.pop %v153
    %v156 = vrsqrt.pop %v154
    %v159 = vcombine.low %v155, %v156
    %v161 = vunpack.c.l.s4 1966171168
    %v162 = vunpack.c.0.s8 %v161
    %v163 = vlaneseq
    %v164 = vshrl.u32 %v163, 7
    %v165 = vsub.s32 %v162, %v164
    %v166 = vrot.slane %v159, %v165
    %v168 = vunpack.c.l.s4 1966171168
    %v169 = vunpack.c.0.s8 %v168
    %v170 = vlaneseq
    %v171 = vshrl.u32 %v170, 7
    %v172 = vsub.s32 %v169, %v171
    %v173 = vrot.slane %v166, %v172
    %v175 = vmul.f32 %v152, %v173
    %v176 = vld [vmem:[%s4] sm:$0x3]
    %v178 = vlaneseq
    %v179 = vshrl.u32 %v178, 7
    %v180 = vsub.s32 0, %v179
    %v181 = vrot.slane %v175, %v180
    %v182 = vlaneseq
    %v183 = vshrl.u32 %v182, 7
    %v184 = vsub.s32 1, %v183
    %v185 = vrot.slane %v175, %v184
    %v188 = vmul.f32 %v130, %v181
    %v189 = vmul.f32 %v131, %v185
    %v192 = vcombine.low %v188, %v189
    %v194 = vunpack.c.l.s4 1966171168
    %v195 = vunpack.c.0.s8 %v194
    %v196 = vlaneseq
    %v197 = vshrl.u32 %v196, 7
    %v198 = vsub.s32 %v195, %v197
    %v199 = vrot.slane %v192, %v198
    %v201 = vunpack.c.l.s4 1966171168
    %v202 = vunpack.c.0.s8 %v201
    %v203 = vlaneseq
    %v204 = vshrl.u32 %v203, 7
    %v205 = vsub.s32 %v202, %v204
    %v206 = vrot.slane %v199, %v205
    %v208 = vsub.f32 %v176, %v206
    %v209 = vmul.f32 %v111, %v181
    %v210 = vmul.f32 %v113, %v185
    %v212 = vlaneseq
    %v213 = vshrl.u32 %v212, 7
    %v214 = vsub.s32 0, %v213
    %v215 = vrot.slane %v208, %v214
    %v216 = vlaneseq
    %v217 = vshrl.u32 %v216, 7
    %v218 = vsub.s32 1, %v217
    %v219 = vrot.slane %v208, %v218
    %v222 = vadd.f32 %v209, %v215
    %v223 = vadd.f32 %v210, %v219
    %v224 = vmax.f32 %v222, 0.0
    %v225 = vmax.f32 %v223, 0.0
    %v226 = vlaneseq
    %v227 = vshrl.u32 %v226, 7
    %v228 = vlaneseq
    %v229 = vand.u32 %v228, 127
    %v230 = vadd.s32 %v229, 128
    %s231 = smul.u32 0, 256
    %v232 = vstv %s231
    %v233 = vadd.s32 %v229, %v232
    %v234 = vadd.s32 %v230, %v232
    %v235 = vmul.u32 %v227, 256
    %v236 = vadd.s32 %v235, %v233
    %v237 = vadd.s32 %v235, %v234
    %s238 = sld [smem:[#allocation3]]
    %s239 = smul.u32 %s238, 668265263
    %v240 = vstv %s239
    %v241 = vadd.s32 %v236, %v240
    %v242 = vadd.s32 %v237, %v240
    %v243 = vshrl.u32 %v241, 16
    %v244 = vshrl.u32 %v242, 16
    %v245 = vxor.u32 %v241, %v243
    %v246 = vxor.u32 %v242, %v244
    %v247 = vmul.u32 %v245, 73244475
    %v248 = vmul.u32 %v246, 73244475
    %v249 = vshrl.u32 %v247, 13
    %v250 = vshrl.u32 %v248, 13
    %v251 = vxor.u32 %v247, %v249
    %v252 = vxor.u32 %v248, %v250
    %v253 = vmul.u32 %v251, 73244475
    %v254 = vmul.u32 %v252, 73244475
    %v255 = vshrl.u32 %v253, 16
    %v256 = vshrl.u32 %v254, 16
    %v257 = vxor.u32 %v253, %v255
    %v258 = vxor.u32 %v254, %v256
    %v259 = vand.u32 %v257, 16777215
    %v260 = vand.u32 %v258, 16777215
    %vm261 = vcmp.ge.s32.totalorder %v259, 1677722
    %vm262 = vcmp.ge.s32.totalorder %v260, 1677722
    %v263 = vmul.f32 %v224, 1.1111112
    %v264 = vmul.f32 %v225, 1.1111112
    %v265 = vsel %vm261, %v263, 0.0
    %v266 = vsel %vm262, %v264, 0.0
    %267 = vst [vmem:[#allocation9] sm:$0xff] %v265
    %268 = vst [vmem:[#allocation9 + $0x8] sm:$0xff] %v266
    // Predicated region
    $region26: #{tpu_custom_call.1} parent=1 // pred_check
      _
    $region27: #{tpu_custom_call.1} parent=1 // pred_check_branch
      %270 = sbr.rel (0) target = $region29
    $region28: #{tpu_custom_call.1} parent=1 // pred_region
      %s272 = ssub.s32 256, 256
      %273 = vsyncadd [#allocation6], %s272
      %s275 = sshll.u32 [#allocation9], 4
      %s276 = int_to_ptr.vmem [resolvable:$true] %s275
      %278 = dma.vmem_to_hbm [thread:$0]  %s276, 256, %s5, [#allocation6]
    $region29: #{tpu_custom_call.1} parent=1 // pred_fallthru
      _
    // Predicated region
    $region30: #{tpu_custom_call.1} parent=1 // pred_check
      _
    $region31: #{tpu_custom_call.1} parent=1 // pred_check_branch
      %280 = sbr.rel (0) target = $region33
    $region32: #{tpu_custom_call.1} parent=1 // pred_region
      %281 = dma.done [#allocation6], 256
    $region33: #{tpu_custom_call.1} parent=1 // pred_fallthru
      _
    %282 = vsyncpa [#allocation5], 1
    %283 = vsyncpa [#allocation8], 1
    %284 = vsyncpa [#allocation6], 1

</llo_original>
